<compile_context>
chip_gen: v7x
topology: tpu7x:2x2x1
jax: 0.10.0
libtpu: 0.0.40
codegen_flags: <defaults>
</compile_context>

<pallas_src>
from functools import partial

import jax
import jax.numpy as jnp
from jax.experimental import pallas as pl
from jax.experimental.pallas import tpu as pltpu

LANE = 128  # TPU lane width


def _round_up(x: int, m: int) -> int:
    return ((x + m - 1) // m) * m


def _mlp_fused_kernel(x_ref, *refs, sigmoid_layer: int, num_layers: int):
    """Fused MLP forward on one row-tile.

    refs = (w0, b0, w1, b1, ..., w_{L-1}, b_{L-1}, o_ref)
      x_ref: [bm, n0] f32      w_i: [n_i(_pad), m_i(_pad)] bf16
      b_i:   [1, m_i(_pad)] f32      o_ref: [bm, m_last] f32
    Intermediate activations live in vregs; only the final result is stored.
    Matmuls run with bf16 operands + f32 MXU accumulation; all elementwise
    post-processing (bias, ReLU, sigmoid) stays f32 (v5e-friendly).
    """
    o_ref = refs[-1]
    h = x_ref[...]  # f32
    for i in range(num_layers):  # Python-unrolled on purpose (scheduler overlap)
        w = refs[2 * i][...]          # bf16 [n_i, m_i]
        b = refs[2 * i + 1][...]      # f32  [1, m_i]
        y = jnp.dot(h.astype(jnp.bfloat16), w,
                    preferred_element_type=jnp.float32) + b
        if i == sigmoid_layer:
            h = jax.nn.sigmoid(y)
        else:
            h = jnp.maximum(y, 0.0)
    o_ref[...] = h.astype(o_ref.dtype)


def prep_params(params):
    """One-time conversion of PyTorch-convention params to kernel-ready form.

    Input  : [(W_i of shape (m_i, n_i) f32, b_i of shape (m_i,) f32), ...]
    Output : [(Wt_i of shape (in_pad_i, out_pad_i) bf16,
               b2_i of shape (1, out_pad_i) f32), ...]
    Hidden widths are zero-padded to the 128-lane width; first in-dim and last
    out-dim stay exact so the forward path needs no per-call pad/slice.
    Padding is exact because padded bias lanes are 0 and the NEXT layer's
    padded weight rows are 0 (so sigmoid(0)=0.5 on padded lanes is killed).
    """
    L = len(params)
    prepped = []
    in_dim = params[0][0].shape[1]  # true input width of the MLP
    for i, (w, b) in enumerate(params):
        m, n = w.shape
        out_dim = m if i == L - 1 else _round_up(m, LANE)
        w_t = jnp.zeros((in_dim, out_dim), jnp.float32).at[:n, :m].set(w.T)
        b2 = jnp.zeros((1, out_dim), jnp.float32).at[:, :m].set(b)
        prepped.append((w_t.astype(jnp.bfloat16), b2))  # bf16 weights, f32 bias
        in_dim = out_dim
    return prepped


def mlp_forward(x, prepped, sigmoid_layer: int, block_rows: int = 256):
    """Full MLP forward in ONE pallas_call.

    A 1-D grid tiles the row (batch) dimension; weight/bias index_maps return
    a constant block index so weights stay VMEM-resident across row tiles
    (one weight DMA per call, not per row tile / per forward).
    """
    B, n0 = x.shape
    L = len(prepped)
    m_out = prepped[-1][0].shape[1]

    bm = min(block_rows, B)
    grid = (pl.cdiv(B, bm),)

    flat_inputs = [x]
    in_specs = [pl.BlockSpec((bm, n0), lambda i: (i, 0))]
    for w, b in prepped:
        flat_inputs.append(w)
        flat_inputs.append(b)
        in_specs.append(pl.BlockSpec(w.shape, lambda i: (0, 0)))
        in_specs.append(pl.BlockSpec(b.shape, lambda i: (0, 0)))

    return pl.pallas_call(
        partial(_mlp_fused_kernel, sigmoid_layer=sigmoid_layer, num_layers=L),
        out_shape=jax.ShapeDtypeStruct((B, m_out), jnp.float32),
        grid=grid,
        in_specs=in_specs,
        out_specs=pl.BlockSpec((bm, m_out), lambda i: (i, 0)),
        compiler_params=pltpu.CompilerParams(
            dimension_semantics=("parallel",)),  # shards row tiles on v7x's 2 TCs
    )(*flat_inputs)


# jit the wrapper so the single custom call is dispatched without extra XLA glue.
mlp_forward = jax.jit(mlp_forward, static_argnames=("sigmoid_layer", "block_rows"))


def init_mlp_params(key, ln):
    """Deterministic init matching nn.Linear: W[i] is (ln[i+1], ln[i]),
    b[i] is (ln[i+1],), uniform(-1/sqrt(n), 1/sqrt(n)) like PyTorch."""
    params = []
    for i in range(len(ln) - 1):
        n, m = ln[i], ln[i + 1]
        key, kw, kb = jax.random.split(key, 3)
        bound = 1.0 / jnp.sqrt(jnp.float32(n))
        w = jax.random.uniform(kw, (m, n), jnp.float32, -bound, bound)
        b = jax.random.uniform(kb, (m,), jnp.float32, -bound, bound)
        params.append((w, b))
    return params


def mlp_reference(x, params, sigmoid_layer: int):
    """Pure-JAX f32 reference on the ORIGINAL (unpadded, PyTorch-layout) params."""
    for i, (w, b) in enumerate(params):
        y = x @ w.T + b
        x = jax.nn.sigmoid(y) if i == sigmoid_layer else jnp.maximum(y, 0.0)
    return x


if __name__ == "__main__":
    # Small shapes implied by the module: ln = layer widths, batch of inputs.
    ln = [32, 64, 32, 16]      # 3 Linear layers
    sigmoid_layer = 1          # layer 1 uses Sigmoid, others ReLU

    key = jax.random.PRNGKey(0)
    key, kx_small, kx_big = jax.random.split(key, 3)
    params = init_mlp_params(key, ln)

    # One-time param prep (transpose + bias reshape + lane padding + bf16 cast).
    prepped = prep_params(params)

    # bf16 matmul operands -> loosened tolerance vs the f32 reference.
    ATOL, RTOL = 3e-2, 3e-2

    # 1) Small single-tile forward (batch=8): one grid step.
    x_small = jax.random.normal(kx_small, (8, ln[0]), jnp.float32)
    out_small = jax.block_until_ready(mlp_forward(x_small, prepped, sigmoid_layer))
    ref_small = mlp_reference(x_small, params, sigmoid_layer)
    assert out_small.shape == (8, ln[-1])
    assert jnp.allclose(out_small, ref_small, atol=ATOL, rtol=RTOL), \
        "mismatch vs reference (small batch)"

    # 2) Batched forward (256 stacked rows, 128-row tiles): weights are DMA'd
    #    once and stay VMEM-resident across the 2 grid steps; row axis is
    #    'parallel' so v7x uses both TensorCores.
    x_big = jax.random.normal(kx_big, (256, ln[0]), jnp.float32)
    out_big = jax.block_until_ready(
        mlp_forward(x_big, prepped, sigmoid_layer, block_rows=128))
    ref_big = mlp_reference(x_big, params, sigmoid_layer)
    assert out_big.shape == (256, ln[-1])
    assert jnp.allclose(out_big, ref_big, atol=ATOL, rtol=RTOL), \
        "mismatch vs reference (batched/gridded)"

    print("KERNEL_OK")
</pallas_src>

<mosaic_0001>
module attributes {stable_mosaic.version = 11 : i64} {
  func.func @_mlp_fused_kernel(%arg0: i32, %arg1: memref<8x32xf32, #tpu.memory_space<vmem>>, %arg2: memref<32x128xbf16, #tpu.memory_space<vmem>>, %arg3: memref<1x128xf32, #tpu.memory_space<vmem>>, %arg4: memref<128x128xbf16, #tpu.memory_space<vmem>>, %arg5: memref<1x128xf32, #tpu.memory_space<vmem>>, %arg6: memref<128x16xbf16, #tpu.memory_space<vmem>>, %arg7: memref<1x16xf32, #tpu.memory_space<vmem>>, %arg8: memref<8x16xf32, #tpu.memory_space<vmem>>) attributes {dimension_semantics = [#tpu.dimension_semantics<parallel>], iteration_bounds = array<i64: 1>, scalar_prefetch = 0 : i64, scratch_operands = 0 : i64, tpu.core_type = #tpu.core_type<tc>, window_params = [{transform_indices = @transform_0, window_bounds = array<i64: 8, 32>}, {pipeline_mode = #tpu.pipeline_mode<synchronous>, transform_indices = @transform_1, window_bounds = array<i64: 32, 128>}, {pipeline_mode = #tpu.pipeline_mode<synchronous>, transform_indices = @transform_2, window_bounds = array<i64: 1, 128>}, {pipeline_mode = #tpu.pipeline_mode<synchronous>, transform_indices = @transform_3, window_bounds = array<i64: 128, 128>}, {pipeline_mode = #tpu.pipeline_mode<synchronous>, transform_indices = @transform_4, window_bounds = array<i64: 1, 128>}, {pipeline_mode = #tpu.pipeline_mode<synchronous>, transform_indices = @transform_5, window_bounds = array<i64: 128, 16>}, {pipeline_mode = #tpu.pipeline_mode<synchronous>, transform_indices = @transform_6, window_bounds = array<i64: 1, 16>}, {transform_indices = @transform_7, window_bounds = array<i64: 8, 16>}]} {
    %c0 = arith.constant 0 : index
    %c0_0 = arith.constant 0 : index
    %0 = vector.load %arg1[%c0, %c0_0] : memref<8x32xf32, #tpu.memory_space<vmem>>, vector<8x32xf32>
    %c0_1 = arith.constant 0 : index
    %c0_2 = arith.constant 0 : index
    %1 = vector.load %arg2[%c0_1, %c0_2] : memref<32x128xbf16, #tpu.memory_space<vmem>>, vector<32x128xbf16>
    %c0_3 = arith.constant 0 : index
    %c0_4 = arith.constant 0 : index
    %2 = vector.load %arg3[%c0_3, %c0_4] : memref<1x128xf32, #tpu.memory_space<vmem>>, vector<1x128xf32>
    %3 = arith.truncf %0 : vector<8x32xf32> to vector<8x32xbf16>
    %cst = arith.constant dense<0.000000e+00> : vector<8x128xf32>
    %4 = tpu.matmul %3, %1, %cst {dimension_numbers = #tpu.dot_dimension_numbers<[1], [0], [0], [1], [0, 0, 1, 1], [], []>} : vector<8x32xbf16>, vector<32x128xbf16>, vector<8x128xf32> -> vector<8x128xf32>
    %5 = vector.broadcast %2 : vector<1x128xf32> to vector<8x128xf32>
    %6 = arith.addf %4, %5 : vector<8x128xf32>
    %cst_5 = arith.constant 0.000000e+00 : f32
    %7 = vector.broadcast %cst_5 : f32 to vector<8x128xf32>
    %8 = arith.maximumf %6, %7 : vector<8x128xf32>
    %c0_6 = arith.constant 0 : index
    %c0_7 = arith.constant 0 : index
    %9 = vector.load %arg4[%c0_6, %c0_7] : memref<128x128xbf16, #tpu.memory_space<vmem>>, vector<128x128xbf16>
    %c0_8 = arith.constant 0 : index
    %c0_9 = arith.constant 0 : index
    %10 = vector.load %arg5[%c0_8, %c0_9] : memref<1x128xf32, #tpu.memory_space<vmem>>, vector<1x128xf32>
    %11 = arith.truncf %8 : vector<8x128xf32> to vector<8x128xbf16>
    %cst_10 = arith.constant dense<0.000000e+00> : vector<8x128xf32>
    %12 = tpu.matmul %11, %9, %cst_10 {dimension_numbers = #tpu.dot_dimension_numbers<[1], [0], [0], [1], [0, 0, 1, 1], [], []>} : vector<8x128xbf16>, vector<128x128xbf16>, vector<8x128xf32> -> vector<8x128xf32>
    %13 = vector.broadcast %10 : vector<1x128xf32> to vector<8x128xf32>
    %14 = arith.addf %12, %13 : vector<8x128xf32>
    %15 = arith.negf %14 : vector<8x128xf32>
    %16 = math.exp %15 : vector<8x128xf32>
    %cst_11 = arith.constant 1.000000e+00 : f32
    %17 = vector.broadcast %cst_11 : f32 to vector<8x128xf32>
    %18 = arith.addf %17, %16 : vector<8x128xf32>
    %19 = arith.divf %17, %18 : vector<8x128xf32>
    %c0_12 = arith.constant 0 : index
    %c0_13 = arith.constant 0 : index
    %20 = vector.load %arg6[%c0_12, %c0_13] : memref<128x16xbf16, #tpu.memory_space<vmem>>, vector<128x16xbf16>
    %c0_14 = arith.constant 0 : index
    %c0_15 = arith.constant 0 : index
    %21 = vector.load %arg7[%c0_14, %c0_15] : memref<1x16xf32, #tpu.memory_space<vmem>>, vector<1x16xf32>
    %22 = arith.truncf %19 : vector<8x128xf32> to vector<8x128xbf16>
    %cst_16 = arith.constant dense<0.000000e+00> : vector<8x16xf32>
    %23 = tpu.matmul %22, %20, %cst_16 {dimension_numbers = #tpu.dot_dimension_numbers<[1], [0], [0], [1], [0, 0, 1, 1], [], []>} : vector<8x128xbf16>, vector<128x16xbf16>, vector<8x16xf32> -> vector<8x16xf32>
    %24 = vector.broadcast %21 : vector<1x16xf32> to vector<8x16xf32>
    %25 = arith.addf %23, %24 : vector<8x16xf32>
    %cst_17 = arith.constant 0.000000e+00 : f32
    %26 = vector.broadcast %cst_17 : f32 to vector<8x16xf32>
    %27 = arith.maximumf %25, %26 : vector<8x16xf32>
    %c0_18 = arith.constant 0 : index
    %c0_19 = arith.constant 0 : index
    %28 = vector.load %arg8[%c0_18, %c0_19] : memref<8x16xf32, #tpu.memory_space<vmem>>, vector<8x16xf32>
    tpu.vector_store %arg8[%c0_18, %c0_19], %27 {strides = array<i32>} : memref<8x16xf32, #tpu.memory_space<vmem>>, vector<8x16xf32>,
    return
  }
  func.func @transform_0(%arg0: i32) -> (i32, i32) {
    %c0_i32 = arith.constant 0 : i32
    %c0_i32_0 = arith.constant 0 : i32
    return %arg0, %c0_i32 : i32, i32
  }
  func.func @transform_1(%arg0: i32) -> (i32, i32) {
    %c0_i32 = arith.constant 0 : i32
    %c0_i32_0 = arith.constant 0 : i32
    %c0_i32_1 = arith.constant 0 : i32
    return %c0_i32, %c0_i32_0 : i32, i32
  }
  func.func @transform_2(%arg0: i32) -> (i32, i32) {
    %c0_i32 = arith.constant 0 : i32
    %c0_i32_0 = arith.constant 0 : i32
    %c0_i32_1 = arith.constant 0 : i32
    return %c0_i32, %c0_i32_0 : i32, i32
  }
  func.func @transform_3(%arg0: i32) -> (i32, i32) {
    %c0_i32 = arith.constant 0 : i32
    %c0_i32_0 = arith.constant 0 : i32
    %c0_i32_1 = arith.constant 0 : i32
    return %c0_i32, %c0_i32_0 : i32, i32
  }
  func.func @transform_4(%arg0: i32) -> (i32, i32) {
    %c0_i32 = arith.constant 0 : i32
    %c0_i32_0 = arith.constant 0 : i32
    %c0_i32_1 = arith.constant 0 : i32
    return %c0_i32, %c0_i32_0 : i32, i32
  }
  func.func @transform_5(%arg0: i32) -> (i32, i32) {
    %c0_i32 = arith.constant 0 : i32
    %c0_i32_0 = arith.constant 0 : i32
    %c0_i32_1 = arith.constant 0 : i32
    return %c0_i32, %c0_i32_0 : i32, i32
  }
  func.func @transform_6(%arg0: i32) -> (i32, i32) {
    %c0_i32 = arith.constant 0 : i32
    %c0_i32_0 = arith.constant 0 : i32
    %c0_i32_1 = arith.constant 0 : i32
    return %c0_i32, %c0_i32_0 : i32, i32
  }
  func.func @transform_7(%arg0: i32) -> (i32, i32) {
    %c0_i32 = arith.constant 0 : i32
    %c0_i32_0 = arith.constant 0 : i32
    return %arg0, %c0_i32 : i32, i32
  }
}

</mosaic_0001>

<llo_original>
// kernel: mlp_forward.1
$region0: #{mlp_forward.1}
  #allocation0 [shape = 'u32[]', space=smem, size = 0x4, offset = 0x4, fixed_abs, tag = 'smem constant byte address 0x4 - core index']
  #allocation1 [shape = 'u32[144,128]{1,0:T(1,128)}', space=vmem, size = 0x12000, scoped, tag = 'internal scratch']
  %s0 = inlined_call_operand.hbm [shape: f32[8,32], index: 0, kind: input, shape index: {}]
  %s1 = inlined_call_operand.vmem [shape: bf16[32,128], index: 1, kind: input, shape index: {}]
  %s2 = inlined_call_operand.vmem [shape: f32[1,128], index: 2, kind: input, shape index: {}]
  %s3 = inlined_call_operand.vmem [shape: bf16[128,128], index: 3, kind: input, shape index: {}]
  %s4 = inlined_call_operand.vmem [shape: f32[1,128], index: 4, kind: input, shape index: {}]
  %s5 = inlined_call_operand.vmem [shape: bf16[128,16], index: 5, kind: input, shape index: {}]
  %s6 = inlined_call_operand.vmem [shape: f32[1,16], index: 6, kind: input, shape index: {}]
  %s7 = inlined_call_operand.hbm [shape: f32[8,16], index: 7, kind: output, shape index: {}]
  %s8 = sld [smem:[#allocation0]]
  $region42: #{mlp_forward.1} parent=0
    _
  %s10 = ssub.s32 1, %s8
  %s11 = scalar_select 0, %s10, %s8
  $region1: #{mlp_forward.1} parent=0
    #allocation2 [shape = 'u8[4096]{0}', space=vmem, size = 0x1000, scoped, tag = 'input window, operand 0, single buffered']
    #allocation3 [shape = 's32[1]{0}', space=sflag, size = 0x4, scoped, tag = 'scoped memory for mlp_forward.1']
    #allocation4 [shape = 's32[1]{0}', space=sflag, size = 0x4, scoped, tag = 'scoped memory for mlp_forward.1']
    #allocation5 [shape = 'u8[4096]{0}', space=vmem, size = 0x1000, scoped, tag = 'output window, operand 0, single buffered']
    %12 = vsyncpa [#allocation3], 0
    %13 = vsyncpa [#allocation4], 0
    // Predicated region
    $region2: #{mlp_forward.1} parent=1 // pred_check
      _
    $region3: #{mlp_forward.1} parent=1 // pred_check_branch
      %15 = sbr.rel (0) target = $region5
    $region4: #{mlp_forward.1} parent=1 // pred_region
      %s17 = ssub.s32 128, 128
      %18 = vsyncadd [#allocation3], %s17
      %s20 = sshll.u32 [#allocation2], 4
      %s21 = int_to_ptr.vmem [resolvable:$true] %s20
      %23 = dma.hbm_to_vmem [thread:$0]  %s0, 128, %s21, [#allocation3]
    $region5: #{mlp_forward.1} parent=1 // pred_fallthru
      _
    // Predicated region
    $region6: #{mlp_forward.1} parent=1 // pred_check
      _
    $region7: #{mlp_forward.1} parent=1 // pred_check_branch
      %25 = sbr.rel (0) target = $region9
    $region8: #{mlp_forward.1} parent=1 // pred_region
      _
    $region9: #{mlp_forward.1} parent=1 // pred_fallthru
      _
    // Predicated region
    $region10: #{mlp_forward.1} parent=1 // pred_check
      _
    $region11: #{mlp_forward.1} parent=1 // pred_check_branch
      %27 = sbr.rel (0) target = $region13
    $region12: #{mlp_forward.1} parent=1 // pred_region
      _
    $region13: #{mlp_forward.1} parent=1 // pred_fallthru
      _
    // Predicated region
    $region14: #{mlp_forward.1} parent=1 // pred_check
      _
    $region15: #{mlp_forward.1} parent=1 // pred_check_branch
      %29 = sbr.rel (0) target = $region17
    $region16: #{mlp_forward.1} parent=1 // pred_region
      _
    $region17: #{mlp_forward.1} parent=1 // pred_fallthru
      _
    // Predicated region
    $region18: #{mlp_forward.1} parent=1 // pred_check
      _
    $region19: #{mlp_forward.1} parent=1 // pred_check_branch
      %31 = sbr.rel (0) target = $region21
    $region20: #{mlp_forward.1} parent=1 // pred_region
      _
    $region21: #{mlp_forward.1} parent=1 // pred_fallthru
      _
    // Predicated region
    $region22: #{mlp_forward.1} parent=1 // pred_check
      _
    $region23: #{mlp_forward.1} parent=1 // pred_check_branch
      %33 = sbr.rel (0) target = $region25
    $region24: #{mlp_forward.1} parent=1 // pred_region
      _
    $region25: #{mlp_forward.1} parent=1 // pred_fallthru
      _
    // Predicated region
    $region26: #{mlp_forward.1} parent=1 // pred_check
      _
    $region27: #{mlp_forward.1} parent=1 // pred_check_branch
      %35 = sbr.rel (0) target = $region29
    $region28: #{mlp_forward.1} parent=1 // pred_region
      _
    $region29: #{mlp_forward.1} parent=1 // pred_fallthru
      _
    // Predicated region
    $region30: #{mlp_forward.1} parent=1 // pred_check
      _
    $region31: #{mlp_forward.1} parent=1 // pred_check_branch
      %37 = sbr.rel (0) target = $region33
    $region32: #{mlp_forward.1} parent=1 // pred_region
      %38 = dma.done [#allocation3], 128
    $region33: #{mlp_forward.1} parent=1 // pred_fallthru
      _
    %v40 = vld [vmem:[#allocation2] sm:$0xff]
    %v41 = vld [vmem:[%s1] sm:$0xf]
    %v42 = vld [vmem:[%s1 + $0x4] sm:$0xf]
    %v43 = vld [vmem:[%s1 + $0x8] sm:$0xf]
    %v44 = vld [vmem:[%s1 + $0xc] sm:$0xf]
    %v45 = vld [vmem:[%s2] sm:$0x1]
    %v46 = vpack.c.bf16 %v40, %v40
    %v48 = vlaneseq
    %v49 = vshrl.u32 %v48, 7
    %v50 = vsub.s32 0, %v49
    %v51 = vrot.slane %v45, %v50
    %v57 = vunpack.c.l.b16 %v41
    %v58 = vunpack.c.l.b16 %v42
    %v59 = vunpack.c.l.b16 %v43
    %v60 = vunpack.c.l.b16 %v44
    %v61 = vpack.c.b16 %v58, %v57
    %v62 = vpack.c.b16 %v60, %v59
    %vm65 = vcmask 261120
    %v67 = vsel %vm65, %v46, 0
    %69 = vmatprep.subr.bf16.mxu0 0
    %70 = vmatpush1.bf16.msra.mxu0 %v61
    %71 = vmatprep.subr.bf16.mxu0 0
    %72 = vmatpush1.bf16.msra.mxu0 %v62
    %73 = vmatprep.subr.bf16.mxu0 0
    %74 = vmatpush1.bf16.msra.mxu0 0
    %75 = vmatprep.subr.bf16.mxu0 0
    %76 = vmatpush1.bf16.msra.mxu0 0
    %77 = vmatprep.subr.bf16.mxu0 0
    %78 = vmatpush1.bf16.msra.mxu0 0
    %79 = vmatprep.subr.bf16.mxu0 0
    %80 = vmatpush1.bf16.msra.mxu0 0
    %81 = vmatprep.subr.bf16.mxu0 0
    %82 = vmatpush1.bf16.msra.mxu0 0
    %83 = vmatprep.subr.bf16.mxu0 0
    %84 = vmatpush1.bf16.msra.mxu0 0
    %85 = vmatprep.subr.bf16.mxu0 0
    %86 = vmatpush1.bf16.msra.mxu0 0
    %87 = vmatprep.subr.bf16.mxu0 0
    %88 = vmatpush1.bf16.msra.mxu0 0
    %89 = vmatprep.subr.bf16.mxu0 0
    %90 = vmatpush1.bf16.msra.mxu0 0
    %91 = vmatprep.subr.bf16.mxu0 0
    %92 = vmatpush1.bf16.msra.mxu0 0
    %93 = vmatprep.subr.bf16.mxu0 0
    %94 = vmatpush1.bf16.msra.mxu0 0
    %95 = vmatprep.subr.bf16.mxu0 0
    %96 = vmatpush1.bf16.msra.mxu0 0
    %97 = vmatprep.subr.bf16.mxu0 0
    %98 = vmatpush1.bf16.msra.mxu0 0
    %99 = vmatprep.subr.bf16.mxu0 0
    %100 = vmatpush1.bf16.msra.mxu0 0
    %101 = vmatprep.mubr.bf16.mxu0 0
    %102 = vmatmul.mubr.bf16.gmra.mrb[0].mxu0 %v67
    %v103 = vpop.f32.mrb[0].mxu0
    %v104 = vadd.f32 %v51, %v103
    %v105 = vpop.f32.mrb[0].mxu0
    %v106 = vpop.f32.mrb[0].mxu0
    %v107 = vpop.f32.mrb[0].mxu0
    %108 = vdwg.mxu0
    %v109 = vmax.f32 %v104, 0.0
    %v110 = vld [vmem:[%s3] sm:$0xf]
    %v111 = vld [vmem:[%s3 + $0x4] sm:$0xf]
    %v112 = vld [vmem:[%s3 + $0x8] sm:$0xf]
    %v113 = vld [vmem:[%s3 + $0xc] sm:$0xf]
    %v114 = vld [vmem:[%s3 + $0x10] sm:$0xf]
    %v115 = vld [vmem:[%s3 + $0x14] sm:$0xf]
    %v116 = vld [vmem:[%s3 + $0x18] sm:$0xf]
    %v117 = vld [vmem:[%s3 + $0x1c] sm:$0xf]
    %v118 = vld [vmem:[%s3 + $0x20] sm:$0xf]
    %v119 = vld [vmem:[%s3 + $0x24] sm:$0xf]
    %v120 = vld [vmem:[%s3 + $0x28] sm:$0xf]
    %v121 = vld [vmem:[%s3 + $0x2c] sm:$0xf]
    %v122 = vld [vmem:[%s3 + $0x30] sm:$0xf]
    %v123 = vld [vmem:[%s3 + $0x34] sm:$0xf]
    %v124 = vld [vmem:[%s3 + $0x38] sm:$0xf]
    %v125 = vld [vmem:[%s3 + $0x3c] sm:$0xf]
    %v126 = vld [vmem:[%s4] sm:$0x1]
    %v127 = vpack.c.bf16 %v109, %v109
    %v129 = vlaneseq
    %v130 = vshrl.u32 %v129, 7
    %v131 = vsub.s32 0, %v130
    %v132 = vrot.slane %v126, %v131
    %v150 = vunpack.c.l.b16 %v110
    %v151 = vunpack.c.l.b16 %v111
    %v152 = vunpack.c.l.b16 %v112
    %v153 = vunpack.c.l.b16 %v113
    %v154 = vunpack.c.l.b16 %v114
    %v155 = vunpack.c.l.b16 %v115
    %v156 = vunpack.c.l.b16 %v116
    %v157 = vunpack.c.l.b16 %v117
    %v158 = vunpack.c.l.b16 %v118
    %v159 = vunpack.c.l.b16 %v119
    %v160 = vunpack.c.l.b16 %v120
    %v161 = vunpack.c.l.b16 %v121
    %v162 = vunpack.c.l.b16 %v122
    %v163 = vunpack.c.l.b16 %v123
    %v164 = vunpack.c.l.b16 %v124
    %v165 = vunpack.c.l.b16 %v125
    %v166 = vpack.c.b16 %v151, %v150
    %v167 = vpack.c.b16 %v153, %v152
    %v168 = vpack.c.b16 %v155, %v154
    %v169 = vpack.c.b16 %v157, %v156
    %v170 = vpack.c.b16 %v159, %v158
    %v171 = vpack.c.b16 %v161, %v160
    %v172 = vpack.c.b16 %v163, %v162
    %v173 = vpack.c.b16 %v165, %v164
    %182 = vmatprep.subr.bf16.mxu0 0
    %183 = vmatpush1.bf16.msra.mxu0 %v166
    %184 = vmatprep.subr.bf16.mxu0 0
    %185 = vmatpush1.bf16.msra.mxu0 %v167
    %186 = vmatprep.subr.bf16.mxu0 0
    %187 = vmatpush1.bf16.msra.mxu0 %v168
    %188 = vmatprep.subr.bf16.mxu0 0
    %189 = vmatpush1.bf16.msra.mxu0 %v169
    %190 = vmatprep.subr.bf16.mxu0 0
    %191 = vmatpush1.bf16.msra.mxu0 %v170
    %192 = vmatprep.subr.bf16.mxu0 0
    %193 = vmatpush1.bf16.msra.mxu0 %v171
    %194 = vmatprep.subr.bf16.mxu0 0
    %195 = vmatpush1.bf16.msra.mxu0 %v172
    %196 = vmatprep.subr.bf16.mxu0 0
    %197 = vmatpush1.bf16.msra.mxu0 %v173
    %198 = vmatprep.subr.bf16.mxu0 0
    %199 = vmatpush1.bf16.msra.mxu0 0
    %200 = vmatprep.subr.bf16.mxu0 0
    %201 = vmatpush1.bf16.msra.mxu0 0
    %202 = vmatprep.subr.bf16.mxu0 0
    %203 = vmatpush1.bf16.msra.mxu0 0
    %204 = vmatprep.subr.bf16.mxu0 0
    %205 = vmatpush1.bf16.msra.mxu0 0
    %206 = vmatprep.subr.bf16.mxu0 0
    %207 = vmatpush1.bf16.msra.mxu0 0
    %208 = vmatprep.subr.bf16.mxu0 0
    %209 = vmatpush1.bf16.msra.mxu0 0
    %210 = vmatprep.subr.bf16.mxu0 0
    %211 = vmatpush1.bf16.msra.mxu0 0
    %212 = vmatprep.subr.bf16.mxu0 0
    %213 = vmatpush1.bf16.msra.mxu0 0
    %214 = vmatprep.mubr.bf16.mxu0 0
    %215 = vmatmul.mubr.bf16.gmra.mrb[0].mxu0 %v127
    %v216 = vpop.f32.mrb[0].mxu0
    %v217 = vadd.f32 %v132, %v216
    %v218 = vpop.f32.mrb[0].mxu0
    %v219 = vpop.f32.mrb[0].mxu0
    %v220 = vpop.f32.mrb[0].mxu0
    %221 = vdwg.mxu0
    %v222 = vxor.u32 %v217, 2147483648
    %v223 = vmul.f32 %v222, 1.442695
    %v224 = vpow.pop %v223
    %v225 = vadd.f32 %v224, 1.0
    %v226 = vrcp.pop %v225
    %v227 = vmul.f32 1.0, %v226
    %v228 = vld [vmem:[%s5] sm:$0xf]
    %v229 = vld [vmem:[%s5 + $0x4] sm:$0xf]
    %v230 = vld [vmem:[%s5 + $0x8] sm:$0xf]
    %v231 = vld [vmem:[%s5 + $0xc] sm:$0xf]
    %v232 = vld [vmem:[%s5 + $0x10] sm:$0xf]
    %v233 = vld [vmem:[%s5 + $0x14] sm:$0xf]
    %v234 = vld [vmem:[%s5 + $0x18] sm:$0xf]
    %v235 = vld [vmem:[%s5 + $0x1c] sm:$0xf]
    %v236 = vld [vmem:[%s5 + $0x20] sm:$0xf]
    %v237 = vld [vmem:[%s5 + $0x24] sm:$0xf]
    %v238 = vld [vmem:[%s5 + $0x28] sm:$0xf]
    %v239 = vld [vmem:[%s5 + $0x2c] sm:$0xf]
    %v240 = vld [vmem:[%s5 + $0x30] sm:$0xf]
    %v241 = vld [vmem:[%s5 + $0x34] sm:$0xf]
    %v242 = vld [vmem:[%s5 + $0x38] sm:$0xf]
    %v243 = vld [vmem:[%s5 + $0x3c] sm:$0xf]
    %v244 = vld [vmem:[%s6] sm:$0x1]
    %v245 = vpack.c.bf16 %v227, %v227
    %v247 = vlaneseq
    %v248 = vshrl.u32 %v247, 7
    %v249 = vsub.s32 0, %v248
    %v250 = vrot.slane %v244, %v249
    %v268 = vunpack.c.l.b16 %v228
    %v269 = vunpack.c.l.b16 %v229
    %v270 = vunpack.c.l.b16 %v230
    %v271 = vunpack.c.l.b16 %v231
    %v272 = vunpack.c.l.b16 %v232
    %v273 = vunpack.c.l.b16 %v233
    %v274 = vunpack.c.l.b16 %v234
    %v275 = vunpack.c.l.b16 %v235
    %v276 = vunpack.c.l.b16 %v236
    %v277 = vunpack.c.l.b16 %v237
    %v278 = vunpack.c.l.b16 %v238
    %v279 = vunpack.c.l.b16 %v239
    %v280 = vunpack.c.l.b16 %v240
    %v281 = vunpack.c.l.b16 %v241
    %v282 = vunpack.c.l.b16 %v242
    %v283 = vunpack.c.l.b16 %v243
    %v284 = vpack.c.b16 %v269, %v268
    %v285 = vpack.c.b16 %v271, %v270
    %v286 = vpack.c.b16 %v273, %v272
    %v287 = vpack.c.b16 %v275, %v274
    %v288 = vpack.c.b16 %v277, %v276
    %v289 = vpack.c.b16 %v279, %v278
    %v290 = vpack.c.b16 %v281, %v280
    %v291 = vpack.c.b16 %v283, %v282
    %300 = vmatprep.subr.bf16.mxu0 0
    %301 = vmatpush1.bf16.msra.mxu0 %v284
    %302 = vmatprep.subr.bf16.mxu0 0
    %303 = vmatpush1.bf16.msra.mxu0 %v285
    %304 = vmatprep.subr.bf16.mxu0 0
    %305 = vmatpush1.bf16.msra.mxu0 %v286
    %306 = vmatprep.subr.bf16.mxu0 0
    %307 = vmatpush1.bf16.msra.mxu0 %v287
    %308 = vmatprep.subr.bf16.mxu0 0
    %309 = vmatpush1.bf16.msra.mxu0 %v288
    %310 = vmatprep.subr.bf16.mxu0 0
    %311 = vmatpush1.bf16.msra.mxu0 %v289
    %312 = vmatprep.subr.bf16.mxu0 0
    %313 = vmatpush1.bf16.msra.mxu0 %v290
    %314 = vmatprep.subr.bf16.mxu0 0
    %315 = vmatpush1.bf16.msra.mxu0 %v291
    %316 = vmatprep.subr.bf16.mxu0 0
    %317 = vmatpush1.bf16.msra.mxu0 0
    %318 = vmatprep.subr.bf16.mxu0 0
    %319 = vmatpush1.bf16.msra.mxu0 0
    %320 = vmatprep.subr.bf16.mxu0 0
    %321 = vmatpush1.bf16.msra.mxu0 0
    %322 = vmatprep.subr.bf16.mxu0 0
    %323 = vmatpush1.bf16.msra.mxu0 0
    %324 = vmatprep.subr.bf16.mxu0 0
    %325 = vmatpush1.bf16.msra.mxu0 0
    %326 = vmatprep.subr.bf16.mxu0 0
    %327 = vmatpush1.bf16.msra.mxu0 0
    %328 = vmatprep.subr.bf16.mxu0 0
    %329 = vmatpush1.bf16.msra.mxu0 0
    %330 = vmatprep.subr.bf16.mxu0 0
    %331 = vmatpush1.bf16.msra.mxu0 0
    %332 = vmatprep.mubr.bf16.mxu0 0
    %333 = vmatmul.mubr.bf16.gmra.mrb[0].mxu0 %v245
    %v334 = vpop.f32.mrb[0].mxu0
    %v335 = vadd.f32 %v250, %v334
    %v336 = vpop.f32.mrb[0].mxu0
    %v337 = vpop.f32.mrb[0].mxu0
    %v338 = vpop.f32.mrb[0].mxu0
    %339 = vdwg.mxu0
    %v340 = vmax.f32 %v335, 0.0
    %vm341 = vcmask 130048
    %342 = vst.msk [vmem:[#allocation5] sm:$0xff] %vm341, %v340
    // Predicated region
    $region34: #{mlp_forward.1} parent=1 // pred_check
      _
    $region35: #{mlp_forward.1} parent=1 // pred_check_branch
      %344 = sbr.rel (0) target = $region37
    $region36: #{mlp_forward.1} parent=1 // pred_region
      %s346 = ssub.s32 128, 128
      %347 = vsyncadd [#allocation4], %s346
      %s349 = sshll.u32 [#allocation5], 4
      %s350 = int_to_ptr.vmem [resolvable:$true] %s349
      %352 = dma.vmem_to_hbm [thread:$0]  %s350, 128, %s7, [#allocation4]
    $region37: #{mlp_forward.1} parent=1 // pred_fallthru
      _
    // Predicated region
    $region38: #{mlp_forward.1} parent=1 // pred_check
      _
    $region39: #{mlp_forward.1} parent=1 // pred_check_branch
      %354 = sbr.rel (0) target = $region41
    $region40: #{mlp_forward.1} parent=1 // pred_region
      %355 = dma.done [#allocation4], 128
    $region41: #{mlp_forward.1} parent=1 // pred_fallthru
      _
    %356 = vsyncpa [#allocation3], 1
    %357 = vsyncpa [#allocation4], 1

</llo_original>
